<compile_context>
chip_gen: v5e
topology: v5e:2x2
jax: 0.10.0
libtpu: 0.0.40
codegen_flags: <defaults>
</compile_context>

<pallas_src>
import functools

import jax
import jax.numpy as jnp
from jax.experimental import pallas as pl
from jax.experimental.pallas import tpu as pltpu

HIDDEN = 32      # hidden_size (small test size; the PyTorch script uses 256)
OUTPUT = 64      # output_size / vocab (small test size)
H_PAD = 128      # lane-padded hidden width (one vreg lane tile)
OUT_PAD = 128    # lane-padded vocab width
assert HIDDEN <= H_PAD and OUTPUT <= OUT_PAD


def decoder_kernel(tok_ref,                                   # SMEM [T] int32 (scalar prefetch)
                   h0_ref, emb_ref, w4_ref, b4_ref, wo_ref, bo_ref,  # VMEM inputs
                   logp_ref, hs_ref,                          # VMEM outputs
                   xh_scr,                                    # VMEM scratch [1, 2*H_PAD]
                   *, num_steps):
    # Zero the (possibly padded) hidden-state rows once so the epilogue matmul
    # never reads uninitialized VMEM for pad rows.
    hs_ref[...] = jnp.zeros_like(hs_ref)

    w4 = w4_ref[...]
    b4 = b4_ref[...]

    def step(t, h):
        # In-kernel embedding gather: dynamic row index into the resident table.
        xh_scr[:, 0:H_PAD] = emb_ref[tok_ref[t]]              # x half  (lane-aligned store)
        xh_scr[:, H_PAD:2 * H_PAD] = h                        # h half  (lane-aligned store)

        # Single fused GRU matmul: [x | h] @ W4, lane slabs = (r, z, n_in, n_hid).
        g = jnp.dot(xh_scr[...], w4, preferred_element_type=jnp.float32) + b4

        r = jax.nn.sigmoid(g[:, 0 * H_PAD:1 * H_PAD])
        z = jax.nn.sigmoid(g[:, 1 * H_PAD:2 * H_PAD])
        n = jnp.tanh(g[:, 2 * H_PAD:3 * H_PAD] + r * g[:, 3 * H_PAD:4 * H_PAD])
        h_new = (1.0 - z) * n + z * h

        hs_ref[pl.ds(t, 1), :] = h_new                        # row t of the state history
        return h_new

    jax.lax.fori_loop(0, num_steps, step, h0_ref[...], unroll=True)

    # --- Epilogue (runs once): batched vocab projection + masked log-softmax ---
    hs = hs_ref[...]                                          # [TP, H_PAD]
    logits = jnp.dot(hs, wo_ref[...], preferred_element_type=jnp.float32) + bo_ref[...]
    lane = jax.lax.broadcasted_iota(jnp.int32, logits.shape, 1)
    logits = jnp.where(lane < OUTPUT, logits, -1e30)          # mask pad vocab lanes
    m = jnp.max(logits, axis=1, keepdims=True)
    shifted = logits - m
    lse = jnp.log(jnp.sum(jnp.exp(shifted), axis=1, keepdims=True))
    logp_ref[...] = shifted - lse                             # full-lane [TP, 128] store


def decoder_decode(tokens, hidden, packed):
    """Run T decode steps (one module-forward per token) inside one pallas_call."""
    T = int(tokens.shape[0])
    TP = max(8, ((T + 7) // 8) * 8)                           # sublane-padded step count
    h0 = jnp.zeros((1, H_PAD), jnp.float32).at[:, :HIDDEN].set(hidden.reshape(1, HIDDEN))

    const2 = lambda i, toks: (0, 0)
    grid_spec = pltpu.PrefetchScalarGridSpec(
        num_scalar_prefetch=1,
        grid=(1,),                                            # single launch; loop is in-kernel
        in_specs=[
            pl.BlockSpec((1, H_PAD), const2),                              # h0
            pl.BlockSpec((OUT_PAD, 1, H_PAD), lambda i, toks: (0, 0, 0)),  # embedding table
            pl.BlockSpec((2 * H_PAD, 4 * H_PAD), const2),                  # fused GRU weight
            pl.BlockSpec((1, 4 * H_PAD), const2),                          # fused GRU bias
            pl.BlockSpec((H_PAD, OUT_PAD), const2),                        # w_out
            pl.BlockSpec((1, OUT_PAD), const2),                            # b_out
        ],
        out_specs=(
            pl.BlockSpec((TP, OUT_PAD), const2),                           # all-step logp
            pl.BlockSpec((TP, H_PAD), const2),                             # all-step hidden
        ),
        scratch_shapes=[pltpu.VMEM((1, 2 * H_PAD), jnp.float32)],          # persistent [x|h]
    )

    logp_pad, hs = pl.pallas_call(
        functools.partial(decoder_kernel, num_steps=T),
        out_shape=(jax.ShapeDtypeStruct((TP, OUT_PAD), jnp.float32),
                   jax.ShapeDtypeStruct((TP, H_PAD), jnp.float32)),
        grid_spec=grid_spec,
        compiler_params=pltpu.CompilerParams(
            dimension_semantics=("arbitrary",),
            vmem_limit_bytes=32 * 1024 * 1024),
    )(tokens.astype(jnp.int32), h0,
      packed["emb"], packed["w4"], packed["b4"], packed["wo"], packed["bo"])

    logp = logp_pad[:T, :OUTPUT]
    h_new = hs[T - 1, :HIDDEN].reshape(1, 1, HIDDEN)
    return logp, h_new


def decoder_forward(token, hidden, packed):
    """PyTorch-style single forward(input, hidden) step."""
    return decoder_decode(token.reshape(1).astype(jnp.int32), hidden, packed)


# ----------------------------------------------------------------------------
# Parameter construction / packing (done once, outside the hot path)
# ----------------------------------------------------------------------------

def init_params(key):
    ks = jax.random.split(key, 7)
    s = 0.1
    return {
        # layouts are already [in_features, 3*H] with PyTorch gate order (r, z, n)
        "embedding": jax.random.normal(ks[0], (OUTPUT, HIDDEN), jnp.float32) * s,
        "w_ih": jax.random.normal(ks[1], (HIDDEN, 3 * HIDDEN), jnp.float32) * s,
        "w_hh": jax.random.normal(ks[2], (HIDDEN, 3 * HIDDEN), jnp.float32) * s,
        "b_ih": jax.random.normal(ks[3], (1, 3 * HIDDEN), jnp.float32) * s,
        "b_hh": jax.random.normal(ks[4], (1, 3 * HIDDEN), jnp.float32) * s,
        "w_out": jax.random.normal(ks[5], (HIDDEN, OUTPUT), jnp.float32) * s,
        "b_out": jax.random.normal(ks[6], (1, OUTPUT), jnp.float32) * s,
    }


def pack_params(p):
    """Pad/fuse the GRU + projection weights into lane-dense kernel operands."""
    H, HP, V, VP = HIDDEN, H_PAD, OUTPUT, OUT_PAD
    w_ih, w_hh = p["w_ih"], p["w_hh"]
    b_ih, b_hh = p["b_ih"][0], p["b_hh"][0]

    # embedding: [VP, 1, HP] so the kernel can dynamically index the leading axis
    emb = jnp.zeros((VP, HP), jnp.float32).at[:V, :H].set(p["embedding"])
    emb = emb.reshape(VP, 1, HP)

    # fused GRU weight: rows 0:HP are the x half, rows HP:2HP the h half;
    # lane slabs (each 128 wide): r | z | n_input-only | n_hidden-only
    w4 = jnp.zeros((2 * HP, 4 * HP), jnp.float32)
    w4 = w4.at[0:H, 0 * HP:0 * HP + H].set(w_ih[:, 0:H])                # r, x part
    w4 = w4.at[HP:HP + H, 0 * HP:0 * HP + H].set(w_hh[:, 0:H])          # r, h part
    w4 = w4.at[0:H, 1 * HP:1 * HP + H].set(w_ih[:, H:2 * H])            # z, x part
    w4 = w4.at[HP:HP + H, 1 * HP:1 * HP + H].set(w_hh[:, H:2 * H])      # z, h part
    w4 = w4.at[0:H, 2 * HP:2 * HP + H].set(w_ih[:, 2 * H:3 * H])        # n, x part only
    w4 = w4.at[HP:HP + H, 3 * HP:3 * HP + H].set(w_hh[:, 2 * H:3 * H])  # n, h part only

    # fused bias: r/z get b_ih+b_hh folded; n keeps b_ih_n and b_hh_n separate
    b4 = jnp.zeros((1, 4 * HP), jnp.float32)
    b4 = b4.at[0, 0 * HP:0 * HP + H].set(b_ih[0:H] + b_hh[0:H])
    b4 = b4.at[0, 1 * HP:1 * HP + H].set(b_ih[H:2 * H] + b_hh[H:2 * H])
    b4 = b4.at[0, 2 * HP:2 * HP + H].set(b_ih[2 * H:3 * H])
    b4 = b4.at[0, 3 * HP:3 * HP + H].set(b_hh[2 * H:3 * H])

    wo = jnp.zeros((HP, VP), jnp.float32).at[:H, :V].set(p["w_out"])
    bo = jnp.zeros((1, VP), jnp.float32).at[0, :V].set(p["b_out"][0])

    return {"emb": emb, "w4": w4, "b4": b4, "wo": wo, "bo": bo}


# ----------------------------------------------------------------------------
# Pure-JAX reference (PyTorch GRU / log-softmax semantics)
# ----------------------------------------------------------------------------

def reference_step(token_id, h, p):
    x = p["embedding"][token_id].reshape(1, HIDDEN)
    gi = x @ p["w_ih"] + p["b_ih"]
    gh = h @ p["w_hh"] + p["b_hh"]
    H = HIDDEN
    r = jax.nn.sigmoid(gi[:, :H] + gh[:, :H])
    z = jax.nn.sigmoid(gi[:, H:2 * H] + gh[:, H:2 * H])
    n = jnp.tanh(gi[:, 2 * H:] + r * gh[:, 2 * H:])
    h_new = (1.0 - z) * n + z * h
    logits = h_new @ p["w_out"] + p["b_out"]
    return jax.nn.log_softmax(logits, axis=1), h_new


def reference_forward(token, hidden, p):
    logp, h = reference_step(int(token.reshape(-1)[0]), hidden.reshape(1, HIDDEN), p)
    return logp, h.reshape(1, 1, HIDDEN)


def reference_decode(tokens, hidden, p):
    h = hidden.reshape(1, HIDDEN)
    outs = []
    for t in range(tokens.shape[0]):
        logp, h = reference_step(int(tokens[t]), h, p)
        outs.append(logp)
    return jnp.concatenate(outs, axis=0), h.reshape(1, 1, HIDDEN)


if __name__ == "__main__":
    key = jax.random.PRNGKey(0)
    k_params, k_hidden = jax.random.split(key)

    params = init_params(k_params)
    packed = pack_params(params)

    token = jnp.array([[5]], dtype=jnp.int32)                          # [1, 1] token id
    hidden = jax.random.normal(k_hidden, (1, 1, HIDDEN), jnp.float32)  # [1, 1, H]

    # --- single-step forward (matches the PyTorch module call) ---
    logp, h1 = jax.jit(decoder_forward)(token, hidden, packed)
    logp = jax.block_until_ready(logp)
    h1 = jax.block_until_ready(h1)
    ref_logp, ref_h1 = reference_forward(token, hidden, params)
    assert logp.shape == (1, OUTPUT) and h1.shape == (1, 1, HIDDEN)
    assert jnp.allclose(logp, ref_logp, atol=2e-5)
    assert jnp.allclose(h1, ref_h1, atol=2e-5)

    # --- multi-step decode: the whole loop + batched epilogue in ONE launch ---
    tokens = jnp.array([5, 17, 3, 42, 9, 0, 63, 31], dtype=jnp.int32)  # T = 8
    logp_seq, h_final = jax.jit(decoder_decode)(tokens, hidden, packed)
    logp_seq = jax.block_until_ready(logp_seq)
    h_final = jax.block_until_ready(h_final)
    ref_seq, ref_hf = reference_decode(tokens, hidden, params)
    assert logp_seq.shape == (tokens.shape[0], OUTPUT)
    assert jnp.allclose(logp_seq, ref_seq, atol=1e-4)
    assert jnp.allclose(h_final, ref_hf, atol=1e-4)

    print("KERNEL_OK")
</pallas_src>

<mosaic_0001>
module attributes {stable_mosaic.version = 11 : i64} {
  func.func @decoder_kernel(%arg0: i32, %arg1: memref<1xi32, #tpu.memory_space<smem>>, %arg2: memref<1x128xf32, #tpu.memory_space<vmem>>, %arg3: memref<128x1x128xf32, #tpu.memory_space<vmem>>, %arg4: memref<256x512xf32, #tpu.memory_space<vmem>>, %arg5: memref<1x512xf32, #tpu.memory_space<vmem>>, %arg6: memref<128x128xf32, #tpu.memory_space<vmem>>, %arg7: memref<1x128xf32, #tpu.memory_space<vmem>>, %arg8: memref<8x128xf32, #tpu.memory_space<vmem>>, %arg9: memref<8x128xf32, #tpu.memory_space<vmem>>, %arg10: memref<1x256xf32, #tpu.memory_space<vmem>>) attributes {dimension_semantics = [#tpu.dimension_semantics<arbitrary>], iteration_bounds = array<i64: 1>, scalar_prefetch = 1 : i64, scratch_operands = 1 : i64, tpu.core_type = #tpu.core_type<tc>, window_params = [{pipeline_mode = #tpu.pipeline_mode<synchronous>, transform_indices = @transform_0, window_bounds = array<i64: 1, 128>}, {pipeline_mode = #tpu.pipeline_mode<synchronous>, transform_indices = @transform_1, window_bounds = array<i64: 128, 1, 128>}, {pipeline_mode = #tpu.pipeline_mode<synchronous>, transform_indices = @transform_2, window_bounds = array<i64: 256, 512>}, {pipeline_mode = #tpu.pipeline_mode<synchronous>, transform_indices = @transform_3, window_bounds = array<i64: 1, 512>}, {pipeline_mode = #tpu.pipeline_mode<synchronous>, transform_indices = @transform_4, window_bounds = array<i64: 128, 128>}, {pipeline_mode = #tpu.pipeline_mode<synchronous>, transform_indices = @transform_5, window_bounds = array<i64: 1, 128>}, {pipeline_mode = #tpu.pipeline_mode<synchronous>, transform_indices = @transform_6, window_bounds = array<i64: 8, 128>}, {pipeline_mode = #tpu.pipeline_mode<synchronous>, transform_indices = @transform_7, window_bounds = array<i64: 8, 128>}]} {
    %cst = arith.constant 0.000000e+00 : f32
    %0 = vector.broadcast %cst : f32 to vector<8x128xf32>
    %c0 = arith.constant 0 : index
    %c0_0 = arith.constant 0 : index
    %1 = vector.load %arg9[%c0, %c0_0] : memref<8x128xf32, #tpu.memory_space<vmem>>, vector<8x128xf32>
    tpu.vector_store %arg9[%c0, %c0_0], %0 {strides = array<i32>} : memref<8x128xf32, #tpu.memory_space<vmem>>, vector<8x128xf32>,
    %c0_1 = arith.constant 0 : index
    %c0_2 = arith.constant 0 : index
    %2 = vector.load %arg4[%c0_1, %c0_2] : memref<256x512xf32, #tpu.memory_space<vmem>>, vector<256x512xf32>
    %c0_3 = arith.constant 0 : index
    %c0_4 = arith.constant 0 : index
    %3 = vector.load %arg5[%c0_3, %c0_4] : memref<1x512xf32, #tpu.memory_space<vmem>>, vector<1x512xf32>
    %c0_5 = arith.constant 0 : index
    %c0_6 = arith.constant 0 : index
    %4 = vector.load %arg2[%c0_5, %c0_6] : memref<1x128xf32, #tpu.memory_space<vmem>>, vector<1x128xf32>
    %c0_i32 = arith.constant 0 : i32
    %5 = arith.index_cast %c0_i32 : i32 to index
    %6 = memref.load %arg1[%5] : memref<1xi32, #tpu.memory_space<smem>>
    %7 = arith.index_cast %6 : i32 to index
    %c0_7 = arith.constant 0 : index
    %c0_8 = arith.constant 0 : index
    %8 = vector.load %arg3[%7, %c0_7, %c0_8] : memref<128x1x128xf32, #tpu.memory_space<vmem>>, vector<1x1x128xf32>
    %9 = vector.shape_cast %8 : vector<1x1x128xf32> to vector<1x128xf32>
    %c0_9 = arith.constant 0 : index
    %c0_10 = arith.constant 0 : index
    %10 = vector.load %arg10[%c0_9, %c0_10] : memref<1x256xf32, #tpu.memory_space<vmem>>, vector<1x128xf32>
    tpu.vector_store %arg10[%c0_9, %c0_10], %9 {strides = array<i32>} : memref<1x256xf32, #tpu.memory_space<vmem>>, vector<1x128xf32>,
    %c0_11 = arith.constant 0 : index
    %c128 = arith.constant 128 : index
    %11 = vector.load %arg10[%c0_11, %c128] : memref<1x256xf32, #tpu.memory_space<vmem>>, vector<1x128xf32>
    tpu.vector_store %arg10[%c0_11, %c128], %4 {strides = array<i32>} : memref<1x256xf32, #tpu.memory_space<vmem>>, vector<1x128xf32>,
    %c0_12 = arith.constant 0 : index
    %c0_13 = arith.constant 0 : index
    %12 = vector.load %arg10[%c0_12, %c0_13] : memref<1x256xf32, #tpu.memory_space<vmem>>, vector<1x256xf32>
    %cst_14 = arith.constant dense<0.000000e+00> : vector<1x512xf32>
    %13 = tpu.matmul %12, %2, %cst_14 {dimension_numbers = #tpu.dot_dimension_numbers<[1], [0], [0], [1], [0, 0, 1, 1], [], []>} : vector<1x256xf32>, vector<256x512xf32>, vector<1x512xf32> -> vector<1x512xf32>
    %14 = arith.addf %13, %3 : vector<1x512xf32>
    %15 = vector.extract_strided_slice %14 {offsets = [0, 0], sizes = [1, 128], strides = [1, 1]} : vector<1x512xf32> to vector<1x128xf32>
    %16 = arith.negf %15 : vector<1x128xf32>
    %17 = math.exp %16 : vector<1x128xf32>
    %cst_15 = arith.constant 1.000000e+00 : f32
    %18 = vector.broadcast %cst_15 : f32 to vector<1x128xf32>
    %19 = arith.addf %18, %17 : vector<1x128xf32>
    %20 = arith.divf %18, %19 : vector<1x128xf32>
    %21 = vector.extract_strided_slice %14 {offsets = [0, 128], sizes = [1, 128], strides = [1, 1]} : vector<1x512xf32> to vector<1x128xf32>
    %22 = arith.negf %21 : vector<1x128xf32>
    %23 = math.exp %22 : vector<1x128xf32>
    %cst_16 = arith.constant 1.000000e+00 : f32
    %24 = vector.broadcast %cst_16 : f32 to vector<1x128xf32>
    %25 = arith.addf %24, %23 : vector<1x128xf32>
    %26 = arith.divf %24, %25 : vector<1x128xf32>
    %27 = vector.extract_strided_slice %14 {offsets = [0, 256], sizes = [1, 128], strides = [1, 1]} : vector<1x512xf32> to vector<1x128xf32>
    %28 = vector.extract_strided_slice %14 {offsets = [0, 384], sizes = [1, 128], strides = [1, 1]} : vector<1x512xf32> to vector<1x128xf32>
    %29 = arith.mulf %20, %28 : vector<1x128xf32>
    %30 = arith.addf %27, %29 : vector<1x128xf32>
    %31 = math.tanh %30 : vector<1x128xf32>
    %cst_17 = arith.constant 1.000000e+00 : f32
    %32 = vector.broadcast %cst_17 : f32 to vector<1x128xf32>
    %33 = arith.subf %32, %26 : vector<1x128xf32>
    %34 = arith.mulf %33, %31 : vector<1x128xf32>
    %35 = arith.mulf %26, %4 : vector<1x128xf32>
    %36 = arith.addf %34, %35 : vector<1x128xf32>
    %37 = arith.index_cast %c0_i32 : i32 to index
    %c0_18 = arith.constant 0 : index
    %38 = vector.load %arg9[%37, %c0_18] : memref<8x128xf32, #tpu.memory_space<vmem>>, vector<1x128xf32>
    tpu.vector_store %arg9[%37, %c0_18], %36 {strides = array<i32>} : memref<8x128xf32, #tpu.memory_space<vmem>>, vector<1x128xf32>,
    %c1_i32 = arith.constant 1 : i32
    %c0_19 = arith.constant 0 : index
    %c0_20 = arith.constant 0 : index
    %39 = vector.load %arg9[%c0_19, %c0_20] : memref<8x128xf32, #tpu.memory_space<vmem>>, vector<8x128xf32>
    %c0_21 = arith.constant 0 : index
    %c0_22 = arith.constant 0 : index
    %40 = vector.load %arg6[%c0_21, %c0_22] : memref<128x128xf32, #tpu.memory_space<vmem>>, vector<128x128xf32>
    %cst_23 = arith.constant dense<0.000000e+00> : vector<8x128xf32>
    %41 = tpu.matmul %39, %40, %cst_23 {dimension_numbers = #tpu.dot_dimension_numbers<[1], [0], [0], [1], [0, 0, 1, 1], [], []>} : vector<8x128xf32>, vector<128x128xf32>, vector<8x128xf32> -> vector<8x128xf32>
    %c0_24 = arith.constant 0 : index
    %c0_25 = arith.constant 0 : index
    %42 = vector.load %arg7[%c0_24, %c0_25] : memref<1x128xf32, #tpu.memory_space<vmem>>, vector<1x128xf32>
    %43 = vector.broadcast %42 : vector<1x128xf32> to vector<8x128xf32>
    %44 = arith.addf %41, %43 : vector<8x128xf32>
    %45 = tpu.iota {dimensions = array<i32: 1>} : vector<8x128xi32>
    %c64_i32 = arith.constant 64 : i32
    %46 = vector.broadcast %c64_i32 : i32 to vector<8x128xi32>
    %47 = arith.cmpi slt, %45, %46 : vector<8x128xi32>
    %cst_26 = arith.constant -1.000000e+30 : f32
    %48 = vector.broadcast %cst_26 : f32 to vector<8x128xf32>
    %49 = arith.select %47, %44, %48 : vector<8x128xi1>, vector<8x128xf32>
    %cst_27 = arith.constant dense<0xFF800000> : vector<8xf32>
    %50 = vector.multi_reduction <maximumf>, %49, %cst_27 [1] : vector<8x128xf32> to vector<8xf32>
    %51 = vector.shape_cast %50 : vector<8xf32> to vector<8x1xf32>
    %52 = vector.broadcast %51 : vector<8x1xf32> to vector<8x128xf32>
    %53 = arith.subf %49, %52 : vector<8x128xf32>
    %54 = math.exp %53 : vector<8x128xf32>
    %cst_28 = arith.constant dense<0.000000e+00> : vector<8xf32>
    %55 = vector.multi_reduction <add>, %54, %cst_28 [1] : vector<8x128xf32> to vector<8xf32>
    %56 = vector.shape_cast %55 : vector<8xf32> to vector<8x1xf32>
    %57 = math.log %56 : vector<8x1xf32>
    %58 = vector.broadcast %57 : vector<8x1xf32> to vector<8x128xf32>
    %59 = arith.subf %53, %58 : vector<8x128xf32>
    %c0_29 = arith.constant 0 : index
    %c0_30 = arith.constant 0 : index
    %60 = vector.load %arg8[%c0_29, %c0_30] : memref<8x128xf32, #tpu.memory_space<vmem>>, vector<8x128xf32>
    tpu.vector_store %arg8[%c0_29, %c0_30], %59 {strides = array<i32>} : memref<8x128xf32, #tpu.memory_space<vmem>>, vector<8x128xf32>,
    return
  }
  func.func @transform_0(%arg0: i32, %arg1: memref<1xi32, #tpu.memory_space<smem>>) -> (i32, i32) {
    %c0_i32 = arith.constant 0 : i32
    %c0_i32_0 = arith.constant 0 : i32
    %c0_i32_1 = arith.constant 0 : i32
    return %c0_i32, %c0_i32_0 : i32, i32
  }
  func.func @transform_1(%arg0: i32, %arg1: memref<1xi32, #tpu.memory_space<smem>>) -> (i32, i32, i32) {
    %c0_i32 = arith.constant 0 : i32
    %c0_i32_0 = arith.constant 0 : i32
    %c0_i32_1 = arith.constant 0 : i32
    %c0_i32_2 = arith.constant 0 : i32
    return %c0_i32, %c0_i32_0, %c0_i32_1 : i32, i32, i32
  }
  func.func @transform_2(%arg0: i32, %arg1: memref<1xi32, #tpu.memory_space<smem>>) -> (i32, i32) {
    %c0_i32 = arith.constant 0 : i32
    %c0_i32_0 = arith.constant 0 : i32
    %c0_i32_1 = arith.constant 0 : i32
    return %c0_i32, %c0_i32_0 : i32, i32
  }
  func.func @transform_3(%arg0: i32, %arg1: memref<1xi32, #tpu.memory_space<smem>>) -> (i32, i32) {
    %c0_i32 = arith.constant 0 : i32
    %c0_i32_0 = arith.constant 0 : i32
    %c0_i32_1 = arith.constant 0 : i32
    return %c0_i32, %c0_i32_0 : i32, i32
  }
  func.func @transform_4(%arg0: i32, %arg1: memref<1xi32, #tpu.memory_space<smem>>) -> (i32, i32) {
    %c0_i32 = arith.constant 0 : i32
    %c0_i32_0 = arith.constant 0 : i32
    %c0_i32_1 = arith.constant 0 : i32
    return %c0_i32, %c0_i32_0 : i32, i32
  }
  func.func @transform_5(%arg0: i32, %arg1: memref<1xi32, #tpu.memory_space<smem>>) -> (i32, i32) {
    %c0_i32 = arith.constant 0 : i32
    %c0_i32_0 = arith.constant 0 : i32
    %c0_i32_1 = arith.constant 0 : i32
    return %c0_i32, %c0_i32_0 : i32, i32
  }
  func.func @transform_6(%arg0: i32, %arg1: memref<1xi32, #tpu.memory_space<smem>>) -> (i32, i32) {
    %c0_i32 = arith.constant 0 : i32
    %c0_i32_0 = arith.constant 0 : i32
    %c0_i32_1 = arith.constant 0 : i32
    return %c0_i32, %c0_i32_0 : i32, i32
  }
  func.func @transform_7(%arg0: i32, %arg1: memref<1xi32, #tpu.memory_space<smem>>) -> (i32, i32) {
    %c0_i32 = arith.constant 0 : i32
    %c0_i32_0 = arith.constant 0 : i32
    %c0_i32_1 = arith.constant 0 : i32
    return %c0_i32, %c0_i32_0 : i32, i32
  }
}

</mosaic_0001>

<llo_original>
// kernel: decoder_forward.1
$region0: #{decoder_forward.1}
  #allocation0 [shape = 'u32[]', space=smem, size = 0x4, offset = 0x4, fixed_abs, tag = 'smem constant byte address 0x4 - core index']
  #allocation1 [shape = 'u32[72,128]{1,0:T(1,128)}', space=vmem, size = 0x9000, scoped, tag = 'internal scratch']
  #allocation2 [shape = 'f32[1,256]{1,0:T(1,128)}', space=vmem, size = 0x400, scoped, tag = 'scratch operand']
  #allocation3 [shape = 's32[1]{0}', space=sflag, size = 0x4, scoped, tag = 'scoped memory for decoder_forward.1']
  #allocation4 [shape = 's32[1]{0:T(128)S(6)}', space=smem, size = 0x200, scoped, tag = 'prefetched SMEM operand 0']
  %s0 = inlined_call_operand.<no memory space> [shape: s32[1], index: 0, kind: input, shape index: {}]
  %s1 = inlined_call_operand.vmem [shape: f32[1,128], index: 1, kind: input, shape index: {}]
  %s2 = inlined_call_operand.hbm [shape: f32[128,1,128], index: 2, kind: input, shape index: {}]
  %s3 = inlined_call_operand.hbm [shape: f32[256,512], index: 3, kind: input, shape index: {}]
  %s4 = inlined_call_operand.vmem [shape: f32[1,512], index: 4, kind: input, shape index: {}]
  %s5 = inlined_call_operand.hbm [shape: f32[128,128], index: 5, kind: input, shape index: {}]
  %s6 = inlined_call_operand.vmem [shape: f32[1,128], index: 6, kind: input, shape index: {}]
  %s7 = inlined_call_operand.vmem [shape: f32[8,128], index: 7, kind: output, shape index: {0}]
  %s8 = inlined_call_operand.vmem [shape: f32[8,128], index: 8, kind: output, shape index: {1}]
  %9 = xla_tuple %s7, %s8
  %s10 = sld [smem:[#allocation0]]
  $region54: #{decoder_forward.1} parent=0
    _
  %s12 = ssub.s32 1, %s10
  %s13 = scalar_select 0, %s12, %s10
  %14 = sst [smem:[#allocation4]] %s0
  $region1: #{decoder_forward.1} parent=0
    #allocation5 [shape = 'u8[65536]{0}', space=vmem, size = 0x10000, scoped, tag = 'input window, operand 2, single buffered']
    #allocation6 [shape = 's32[1]{0}', space=sflag, size = 0x4, scoped, tag = 'scoped memory for decoder_forward.1']
    #allocation7 [shape = 'u8[524288]{0}', space=vmem, size = 0x80000, scoped, tag = 'input window, operand 3, single buffered']
    #allocation8 [shape = 's32[1]{0}', space=sflag, size = 0x4, scoped, tag = 'scoped memory for decoder_forward.1']
    #allocation9 [shape = 'u8[65536]{0}', space=vmem, size = 0x10000, scoped, tag = 'input window, operand 5, single buffered']
    %15 = vsyncpa [#allocation6], 0
    %16 = vsyncpa [#allocation8], 0
    // Predicated region
    $region2: #{decoder_forward.1} parent=1 // pred_check
      _
    $region3: #{decoder_forward.1} parent=1 // pred_check_branch
      %18 = sbr.rel (0) target = $region5
    $region4: #{decoder_forward.1} parent=1 // pred_region
      _
    $region5: #{decoder_forward.1} parent=1 // pred_fallthru
      _
    // Predicated region
    $region6: #{decoder_forward.1} parent=1 // pred_check
      _
    $region7: #{decoder_forward.1} parent=1 // pred_check_branch
      %20 = sbr.rel (0) target = $region9
    $region8: #{decoder_forward.1} parent=1 // pred_region
      %22 = vsyncadd [#allocation6], 0
      %s23 = sshll.u32 %s2, 4
      %s24 = int_to_ptr.hbm [resolvable:$true] %s23
      %s25 = sshll.u32 [#allocation5], 4
      %s26 = int_to_ptr.vmem [resolvable:$true] %s25
      %31 = dma.hbm_to_vmem [thread:$0]  %s24, 2048, %s26, [#allocation6], 16, 16, 1
    $region9: #{decoder_forward.1} parent=1 // pred_fallthru
      _
    // Predicated region
    $region10: #{decoder_forward.1} parent=1 // pred_check
      _
    $region11: #{decoder_forward.1} parent=1 // pred_check_branch
      %33 = sbr.rel (0) target = $region13
    $region12: #{decoder_forward.1} parent=1 // pred_region
      %35 = vsyncadd [#allocation8], 0
      %s36 = sshll.u32 %s3, 4
      %s37 = int_to_ptr.hbm [resolvable:$true] %s36
      %s38 = sshll.u32 [#allocation7], 4
      %s39 = int_to_ptr.vmem [resolvable:$true] %s38
      %44 = dma.hbm_to_vmem [thread:$0]  %s37, 16384, %s39, [#allocation8], 512, 512, 32
    $region13: #{decoder_forward.1} parent=1 // pred_fallthru
      _
    // Predicated region
    $region14: #{decoder_forward.1} parent=1 // pred_check
      _
    $region15: #{decoder_forward.1} parent=1 // pred_check_branch
      %46 = sbr.rel (0) target = $region17
    $region16: #{decoder_forward.1} parent=1 // pred_region
      _
    $region17: #{decoder_forward.1} parent=1 // pred_fallthru
      _
    // Predicated region
    $region18: #{decoder_forward.1} parent=1 // pred_check
      _
    $region19: #{decoder_forward.1} parent=1 // pred_check_branch
      %48 = sbr.rel (0) target = $region21
    $region20: #{decoder_forward.1} parent=1 // pred_region
      %50 = vsyncadd [#allocation8], 0
      %s51 = sshll.u32 %s5, 4
      %s52 = int_to_ptr.hbm [resolvable:$true] %s51
      %s53 = sshll.u32 [#allocation9], 4
      %s54 = int_to_ptr.vmem [resolvable:$true] %s53
      %59 = dma.hbm_to_vmem [thread:$0]  %s52, 2048, %s54, [#allocation8], 128, 128, 8
    $region21: #{decoder_forward.1} parent=1 // pred_fallthru
      _
    // Predicated region
    $region22: #{decoder_forward.1} parent=1 // pred_check
      _
    $region23: #{decoder_forward.1} parent=1 // pred_check_branch
      %61 = sbr.rel (0) target = $region25
    $region24: #{decoder_forward.1} parent=1 // pred_region
      _
    $region25: #{decoder_forward.1} parent=1 // pred_fallthru
      _
    // Predicated region
    $region26: #{decoder_forward.1} parent=1 // pred_check
      _
    $region27: #{decoder_forward.1} parent=1 // pred_check_branch
      %63 = sbr.rel (0) target = $region29
    $region28: #{decoder_forward.1} parent=1 // pred_region
      %65 = dma.done [#allocation6], 2048
    $region29: #{decoder_forward.1} parent=1 // pred_fallthru
      _
    // Predicated region
    $region30: #{decoder_forward.1} parent=1 // pred_check
      _
    $region31: #{decoder_forward.1} parent=1 // pred_check_branch
      %67 = sbr.rel (0) target = $region33
    $region32: #{decoder_forward.1} parent=1 // pred_region
      %69 = dma.done [#allocation8], 16384
    $region33: #{decoder_forward.1} parent=1 // pred_fallthru
      _
    // Predicated region
    $region34: #{decoder_forward.1} parent=1 // pred_check
      _
    $region35: #{decoder_forward.1} parent=1 // pred_check_branch
      %71 = sbr.rel (0) target = $region37
    $region36: #{decoder_forward.1} parent=1 // pred_region
      %73 = dma.done [#allocation8], 2048
    $region37: #{decoder_forward.1} parent=1 // pred_fallthru
      _
    %74 = vst [vmem:[%s8] sm:$0xff] 0.0
    %v75 = vld [vmem:[#allocation7] sm:$0xff]
    %v76 = vld [vmem:[#allocation7 + $0x8] sm:$0xff]
    %v77 = vld [vmem:[#allocation7 + $0x10] sm:$0xff]
    %v78 = vld [vmem:[#allocation7 + $0x18] sm:$0xff]
    %v79 = vld [vmem:[#allocation7 + $0x20] sm:$0xff]
    %v80 = vld [vmem:[#allocation7 + $0x28] sm:$0xff]
    %v81 = vld [vmem:[#allocation7 + $0x30] sm:$0xff]
    %v82 = vld [vmem:[#allocation7 + $0x38] sm:$0xff]
    %v83 = vld [vmem:[#allocation7 + $0x40] sm:$0xff]
    %v84 = vld [vmem:[#allocation7 + $0x48] sm:$0xff]
    %v85 = vld [vmem:[#allocation7 + $0x50] sm:$0xff]
    %v86 = vld [vmem:[#allocation7 + $0x58] sm:$0xff]
    %v87 = vld [vmem:[#allocation7 + $0x60] sm:$0xff]
    %v88 = vld [vmem:[#allocation7 + $0x68] sm:$0xff]
    %v89 = vld [vmem:[#allocation7 + $0x70] sm:$0xff]
    %v90 = vld [vmem:[#allocation7 + $0x78] sm:$0xff]
    %v91 = vld [vmem:[#allocation7 + $0x80] sm:$0xff]
    %v92 = vld [vmem:[#allocation7 + $0x88] sm:$0xff]
    %v93 = vld [vmem:[#allocation7 + $0x90] sm:$0xff]
    %v94 = vld [vmem:[#allocation7 + $0x98] sm:$0xff]
    %v95 = vld [vmem:[#allocation7 + $0xa0] sm:$0xff]
    %v96 = vld [vmem:[#allocation7 + $0xa8] sm:$0xff]
    %v97 = vld [vmem:[#allocation7 + $0xb0] sm:$0xff]
    %v98 = vld [vmem:[#allocation7 + $0xb8] sm:$0xff]
    %v99 = vld [vmem:[#allocation7 + $0xc0] sm:$0xff]
    %v100 = vld [vmem:[#allocation7 + $0xc8] sm:$0xff]
    %v101 = vld [vmem:[#allocation7 + $0xd0] sm:$0xff]
    %v102 = vld [vmem:[#allocation7 + $0xd8] sm:$0xff]
    %v103 = vld [vmem:[#allocation7 + $0xe0] sm:$0xff]
    %v104 = vld [vmem:[#allocation7 + $0xe8] sm:$0xff]
    %v105 = vld [vmem:[#allocation7 + $0xf0] sm:$0xff]
    %v106 = vld [vmem:[#allocation7 + $0xf8] sm:$0xff]
    %v107 = vld [vmem:[#allocation7 + $0x100] sm:$0xff]
    %v108 = vld [vmem:[#allocation7 + $0x108] sm:$0xff]
    %v109 = vld [vmem:[#allocation7 + $0x110] sm:$0xff]
    %v110 = vld [vmem:[#allocation7 + $0x118] sm:$0xff]
    %v111 = vld [vmem:[#allocation7 + $0x120] sm:$0xff]
    %v112 = vld [vmem:[#allocation7 + $0x128] sm:$0xff]
    %v113 = vld [vmem:[#allocation7 + $0x130] sm:$0xff]
    %v114 = vld [vmem:[#allocation7 + $0x138] sm:$0xff]
    %v115 = vld [vmem:[#allocation7 + $0x140] sm:$0xff]
    %v116 = vld [vmem:[#allocation7 + $0x148] sm:$0xff]
    %v117 = vld [vmem:[#allocation7 + $0x150] sm:$0xff]
    %v118 = vld [vmem:[#allocation7 + $0x158] sm:$0xff]
    %v119 = vld [vmem:[#allocation7 + $0x160] sm:$0xff]
    %v120 = vld [vmem:[#allocation7 + $0x168] sm:$0xff]
    %v121 = vld [vmem:[#allocation7 + $0x170] sm:$0xff]
    %v122 = vld [vmem:[#allocation7 + $0x178] sm:$0xff]
    %v123 = vld [vmem:[#allocation7 + $0x180] sm:$0xff]
    %v124 = vld [vmem:[#allocation7 + $0x188] sm:$0xff]
    %v125 = vld [vmem:[#allocation7 + $0x190] sm:$0xff]
    %v126 = vld [vmem:[#allocation7 + $0x198] sm:$0xff]
    %v127 = vld [vmem:[#allocation7 + $0x1a0] sm:$0xff]
    %v128 = vld [vmem:[#allocation7 + $0x1a8] sm:$0xff]
    %v129 = vld [vmem:[#allocation7 + $0x1b0] sm:$0xff]
    %v130 = vld [vmem:[#allocation7 + $0x1b8] sm:$0xff]
    %v131 = vld [vmem:[#allocation7 + $0x1c0] sm:$0xff]
    %v132 = vld [vmem:[#allocation7 + $0x1c8] sm:$0xff]
    %v133 = vld [vmem:[#allocation7 + $0x1d0] sm:$0xff]
    %v134 = vld [vmem:[#allocation7 + $0x1d8] sm:$0xff]
    %v135 = vld [vmem:[#allocation7 + $0x1e0] sm:$0xff]
    %v136 = vld [vmem:[#allocation7 + $0x1e8] sm:$0xff]
    %v137 = vld [vmem:[#allocation7 + $0x1f0] sm:$0xff]
    %v138 = vld [vmem:[#allocation7 + $0x1f8] sm:$0xff]
    %v139 = vld [vmem:[#allocation7 + $0x200] sm:$0xff]
    %v140 = vld [vmem:[#allocation7 + $0x208] sm:$0xff]
    %v141 = vld [vmem:[#allocation7 + $0x210] sm:$0xff]
    %v142 = vld [vmem:[#allocation7 + $0x218] sm:$0xff]
    %v143 = vld [vmem:[#allocation7 + $0x220] sm:$0xff]
    %v144 = vld [vmem:[#allocation7 + $0x228] sm:$0xff]
    %v145 = vld [vmem:[#allocation7 + $0x230] sm:$0xff]
    %v146 = vld [vmem:[#allocation7 + $0x238] sm:$0xff]
    %v147 = vld [vmem:[#allocation7 + $0x240] sm:$0xff]
    %v148 = vld [vmem:[#allocation7 + $0x248] sm:$0xff]
    %v149 = vld [vmem:[#allocation7 + $0x250] sm:$0xff]
    %v150 = vld [vmem:[#allocation7 + $0x258] sm:$0xff]
    %v151 = vld [vmem:[#allocation7 + $0x260] sm:$0xff]
    %v152 = vld [vmem:[#allocation7 + $0x268] sm:$0xff]
    %v153 = vld [vmem:[#allocation7 + $0x270] sm:$0xff]
    %v154 = vld [vmem:[#allocation7 + $0x278] sm:$0xff]
    %v155 = vld [vmem:[#allocation7 + $0x280] sm:$0xff]
    %v156 = vld [vmem:[#allocation7 + $0x288] sm:$0xff]
    %v157 = vld [vmem:[#allocation7 + $0x290] sm:$0xff]
    %v158 = vld [vmem:[#allocation7 + $0x298] sm:$0xff]
    %v159 = vld [vmem:[#allocation7 + $0x2a0] sm:$0xff]
    %v160 = vld [vmem:[#allocation7 + $0x2a8] sm:$0xff]
    %v161 = vld [vmem:[#allocation7 + $0x2b0] sm:$0xff]
    %v162 = vld [vmem:[#allocation7 + $0x2b8] sm:$0xff]
    %v163 = vld [vmem:[#allocation7 + $0x2c0] sm:$0xff]
    %v164 = vld [vmem:[#allocation7 + $0x2c8] sm:$0xff]
    %v165 = vld [vmem:[#allocation7 + $0x2d0] sm:$0xff]
    %v166 = vld [vmem:[#allocation7 + $0x2d8] sm:$0xff]
    %v167 = vld [vmem:[#allocation7 + $0x2e0] sm:$0xff]
    %v168 = vld [vmem:[#allocation7 + $0x2e8] sm:$0xff]
    %v169 = vld [vmem:[#allocation7 + $0x2f0] sm:$0xff]
    %v170 = vld [vmem:[#allocation7 + $0x2f8] sm:$0xff]
    %v171 = vld [vmem:[#allocation7 + $0x300] sm:$0xff]
    %v172 = vld [vmem:[#allocation7 + $0x308] sm:$0xff]
    %v173 = vld [vmem:[#allocation7 + $0x310] sm:$0xff]
    %v174 = vld [vmem:[#allocation7 + $0x318] sm:$0xff]
    %v175 = vld [vmem:[#allocation7 + $0x320] sm:$0xff]
    %v176 = vld [vmem:[#allocation7 + $0x328] sm:$0xff]
    %v177 = vld [vmem:[#allocation7 + $0x330] sm:$0xff]
    %v178 = vld [vmem:[#allocation7 + $0x338] sm:$0xff]
    %v179 = vld [vmem:[#allocation7 + $0x340] sm:$0xff]
    %v180 = vld [vmem:[#allocation7 + $0x348] sm:$0xff]
    %v181 = vld [vmem:[#allocation7 + $0x350] sm:$0xff]
    %v182 = vld [vmem:[#allocation7 + $0x358] sm:$0xff]
    %v183 = vld [vmem:[#allocation7 + $0x360] sm:$0xff]
    %v184 = vld [vmem:[#allocation7 + $0x368] sm:$0xff]
    %v185 = vld [vmem:[#allocation7 + $0x370] sm:$0xff]
    %v186 = vld [vmem:[#allocation7 + $0x378] sm:$0xff]
    %v187 = vld [vmem:[#allocation7 + $0x380] sm:$0xff]
    %v188 = vld [vmem:[#allocation7 + $0x388] sm:$0xff]
    %v189 = vld [vmem:[#allocation7 + $0x390] sm:$0xff]
    %v190 = vld [vmem:[#allocation7 + $0x398] sm:$0xff]
    %v191 = vld [vmem:[#allocation7 + $0x3a0] sm:$0xff]
    %v192 = vld [vmem:[#allocation7 + $0x3a8] sm:$0xff]
    %v193 = vld [vmem:[#allocation7 + $0x3b0] sm:$0xff]
    %v194 = vld [vmem:[#allocation7 + $0x3b8] sm:$0xff]
    %v195 = vld [vmem:[#allocation7 + $0x3c0] sm:$0xff]
    %v196 = vld [vmem:[#allocation7 + $0x3c8] sm:$0xff]
    %v197 = vld [vmem:[#allocation7 + $0x3d0] sm:$0xff]
    %v198 = vld [vmem:[#allocation7 + $0x3d8] sm:$0xff]
    %v199 = vld [vmem:[#allocation7 + $0x3e0] sm:$0xff]
    %v200 = vld [vmem:[#allocation7 + $0x3e8] sm:$0xff]
    %v201 = vld [vmem:[#allocation7 + $0x3f0] sm:$0xff]
    %v202 = vld [vmem:[#allocation7 + $0x3f8] sm:$0xff]
    %v203 = vld [vmem:[%s4] sm:$0xf]
    %v204 = vld [vmem:[%s1] sm:$0x1]
    %s205 = sld [smem:[#allocation4]]
    %s206 = scalar_lea.vmem [#allocation5], %s205
    %v207 = vld [vmem:[%s206] sm:$0x1]
    %v208 = vlaneseq
    %vm209 = vcmp.ge.s32.totalorder %v208, 0
    %vm210 = vcmp.lt.s32.totalorder %v208, 128
    %vm211 = vmand %vm209, %vm210
    %212 = vst.msk [vmem:[#allocation2] sm:$0x1] %vm211, %v207
    %213 = vst.msk [vmem:[#allocation2 + $0x1] sm:$0x1] %vm211, %v204
    %v214 = vld [vmem:[#allocation2] sm:$0x3]
    %v216 = vperm.slane %v214, 0
    %v217 = vperm.slane %v214, 1
    %v221 = vperm.slane %v203, 0
    %v222 = vperm.slane %v203, 1
    %v223 = vperm.slane %v203, 2
    %v224 = vperm.slane %v203, 3
    %229 = vmatpush.msra.mxu0 %v135
    %230 = vmatpush.msra.mxu0 %v131
    %231 = vmatpush.msra.mxu0 %v127
    %232 = vmatpush.msra.mxu0 %v123
    %233 = vmatpush.msra.mxu0 %v119
    %234 = vmatpush.msra.mxu0 %v115
    %235 = vmatpush.msra.mxu0 %v111
    %236 = vmatpush.msra.mxu0 %v107
    %237 = vmatpush.msra.mxu0 %v103
    %238 = vmatpush.msra.mxu0 %v99
    %239 = vmatpush.msra.mxu0 %v95
    %240 = vmatpush.msra.mxu0 %v91
    %241 = vmatpush.msra.mxu0 %v87
    %242 = vmatpush.msra.mxu0 %v83
    %243 = vmatpush.msra.mxu0 %v79
    %244 = vmatpush.msra.mxu0 %v75
    %245 = vmatmul.f32.gmra.mxu0 %v216
    %v246 = vpop.f32.mrf.mxu0
    %v247 = vadd.f32 %v221, %v246
    %248 = vdwg.mxu0
    %249 = vmatpush.msra.mxu0 %v199
    %250 = vmatpush.msra.mxu0 %v195
    %251 = vmatpush.msra.mxu0 %v191
    %252 = vmatpush.msra.mxu0 %v187
    %253 = vmatpush.msra.mxu0 %v183
    %254 = vmatpush.msra.mxu0 %v179
    %255 = vmatpush.msra.mxu0 %v175
    %256 = vmatpush.msra.mxu0 %v171
    %257 = vmatpush.msra.mxu0 %v167
    %258 = vmatpush.msra.mxu0 %v163
    %259 = vmatpush.msra.mxu0 %v159
    %260 = vmatpush.msra.mxu0 %v155
    %261 = vmatpush.msra.mxu0 %v151
    %262 = vmatpush.msra.mxu0 %v147
    %263 = vmatpush.msra.mxu0 %v143
    %264 = vmatpush.msra.mxu0 %v139
    %265 = vmatmul.f32.gmra.mxu0 %v217
    %v266 = vpop.f32.mrf.mxu0
    %v267 = vadd.f32 %v247, %v266
    %268 = vdwg.mxu0
    %269 = vmatpush.msra.mxu0 %v136
    %270 = vmatpush.msra.mxu0 %v132
    %271 = vmatpush.msra.mxu0 %v128
    %272 = vmatpush.msra.mxu0 %v124
    %273 = vmatpush.msra.mxu0 %v120
    %274 = vmatpush.msra.mxu0 %v116
    %275 = vmatpush.msra.mxu0 %v112
    %276 = vmatpush.msra.mxu0 %v108
    %277 = vmatpush.msra.mxu0 %v104
    %278 = vmatpush.msra.mxu0 %v100
    %279 = vmatpush.msra.mxu0 %v96
    %280 = vmatpush.msra.mxu0 %v92
    %281 = vmatpush.msra.mxu0 %v88
    %282 = vmatpush.msra.mxu0 %v84
    %283 = vmatpush.msra.mxu0 %v80
    %284 = vmatpush.msra.mxu0 %v76
    %285 = vmatmul.f32.gmra.mxu0 %v216
    %v286 = vpop.f32.mrf.mxu0
    %v287 = vadd.f32 %v222, %v286
    %288 = vdwg.mxu0
    %289 = vmatpush.msra.mxu0 %v200
    %290 = vmatpush.msra.mxu0 %v196
    %291 = vmatpush.msra.mxu0 %v192
    %292 = vmatpush.msra.mxu0 %v188
    %293 = vmatpush.msra.mxu0 %v184
    %294 = vmatpush.msra.mxu0 %v180
    %295 = vmatpush.msra.mxu0 %v176
    %296 = vmatpush.msra.mxu0 %v172
    %297 = vmatpush.msra.mxu0 %v168
    %298 = vmatpush.msra.mxu0 %v164
    %299 = vmatpush.msra.mxu0 %v160
    %300 = vmatpush.msra.mxu0 %v156
    %301 = vmatpush.msra.mxu0 %v152
    %302 = vmatpush.msra.mxu0 %v148
    %303 = vmatpush.msra.mxu0 %v144
    %304 = vmatpush.msra.mxu0 %v140
    %305 = vmatmul.f32.gmra.mxu0 %v217
    %v306 = vpop.f32.mrf.mxu0
    %v307 = vadd.f32 %v287, %v306
    %308 = vdwg.mxu0
    %309 = vmatpush.msra.mxu0 %v137
    %310 = vmatpush.msra.mxu0 %v133
    %311 = vmatpush.msra.mxu0 %v129
    %312 = vmatpush.msra.mxu0 %v125
    %313 = vmatpush.msra.mxu0 %v121
    %314 = vmatpush.msra.mxu0 %v117
    %315 = vmatpush.msra.mxu0 %v113
    %316 = vmatpush.msra.mxu0 %v109
    %317 = vmatpush.msra.mxu0 %v105
    %318 = vmatpush.msra.mxu0 %v101
    %319 = vmatpush.msra.mxu0 %v97
    %320 = vmatpush.msra.mxu0 %v93
    %321 = vmatpush.msra.mxu0 %v89
    %322 = vmatpush.msra.mxu0 %v85
    %323 = vmatpush.msra.mxu0 %v81
    %324 = vmatpush.msra.mxu0 %v77
    %325 = vmatmul.f32.gmra.mxu0 %v216
    %v326 = vpop.f32.mrf.mxu0
    %v327 = vadd.f32 %v223, %v326
    %328 = vdwg.mxu0
    %329 = vmatpush.msra.mxu0 %v201
    %330 = vmatpush.msra.mxu0 %v197
    %331 = vmatpush.msra.mxu0 %v193
    %332 = vmatpush.msra.mxu0 %v189
    %333 = vmatpush.msra.mxu0 %v185
    %334 = vmatpush.msra.mxu0 %v181
    %335 = vmatpush.msra.mxu0 %v177
    %336 = vmatpush.msra.mxu0 %v173
    %337 = vmatpush.msra.mxu0 %v169
    %338 = vmatpush.msra.mxu0 %v165
    %339 = vmatpush.msra.mxu0 %v161
    %340 = vmatpush.msra.mxu0 %v157
    %341 = vmatpush.msra.mxu0 %v153
    %342 = vmatpush.msra.mxu0 %v149
    %343 = vmatpush.msra.mxu0 %v145
    %344 = vmatpush.msra.mxu0 %v141
    %345 = vmatmul.f32.gmra.mxu0 %v217
    %v346 = vpop.f32.mrf.mxu0
    %v347 = vadd.f32 %v327, %v346
    %348 = vdwg.mxu0
    %349 = vmatpush.msra.mxu0 %v138
    %350 = vmatpush.msra.mxu0 %v134
    %351 = vmatpush.msra.mxu0 %v130
    %352 = vmatpush.msra.mxu0 %v126
    %353 = vmatpush.msra.mxu0 %v122
    %354 = vmatpush.msra.mxu0 %v118
    %355 = vmatpush.msra.mxu0 %v114
    %356 = vmatpush.msra.mxu0 %v110
    %357 = vmatpush.msra.mxu0 %v106
    %358 = vmatpush.msra.mxu0 %v102
    %359 = vmatpush.msra.mxu0 %v98
    %360 = vmatpush.msra.mxu0 %v94
    %361 = vmatpush.msra.mxu0 %v90
    %362 = vmatpush.msra.mxu0 %v86
    %363 = vmatpush.msra.mxu0 %v82
    %364 = vmatpush.msra.mxu0 %v78
    %365 = vmatmul.f32.gmra.mxu0 %v216
    %v366 = vpop.f32.mrf.mxu0
    %v367 = vadd.f32 %v224, %v366
    %368 = vdwg.mxu0
    %369 = vmatpush.msra.mxu0 %v202
    %370 = vmatpush.msra.mxu0 %v198
    %371 = vmatpush.msra.mxu0 %v194
    %372 = vmatpush.msra.mxu0 %v190
    %373 = vmatpush.msra.mxu0 %v186
    %374 = vmatpush.msra.mxu0 %v182
    %375 = vmatpush.msra.mxu0 %v178
    %376 = vmatpush.msra.mxu0 %v174
    %377 = vmatpush.msra.mxu0 %v170
    %378 = vmatpush.msra.mxu0 %v166
    %379 = vmatpush.msra.mxu0 %v162
    %380 = vmatpush.msra.mxu0 %v158
    %381 = vmatpush.msra.mxu0 %v154
    %382 = vmatpush.msra.mxu0 %v150
    %383 = vmatpush.msra.mxu0 %v146
    %384 = vmatpush.msra.mxu0 %v142
    %385 = vmatmul.f32.gmra.mxu0 %v217
    %v386 = vpop.f32.mrf.mxu0
    %v387 = vadd.f32 %v367, %v386
    %388 = vdwg.mxu0
    %v389 = vxor.u32 %v267, 2147483648
    %v390 = vmul.f32 %v389, 1.442695
    %v391 = vpow.pop %v390
    %v392 = vadd.f32 %v391, 1.0
    %v393 = vrcp.pop %v392
    %v394 = vmul.f32 %v392, %v393
    %v395 = vsub.f32 1.0, %v394
    %v396 = vmul.f32 %v393, %v395
    %v397 = vadd.f32 %v393, %v396
    %vm398 = vweird.f32 %v392
    %vm399 = vweird.f32 %v393
    %vm400 = vmor %vm398, %vm399
    %v401 = vsel %vm400, %v393, %v397
    %v402 = vand.u32 2147483647, %v392
    %vm403 = vcmp.eq.f32.partialorder %v402, 8.507059e+37
    %v404 = vand.u32 %v392, 2147483648
    %v405 = vor.u32 1.1754944e-38, %v404
    %v406 = vsel %vm403, %v405, %v401
    %v407 = vmul.f32 1.0, %v406
    %v408 = vxor.u32 %v307, 2147483648
    %v409 = vmul.f32 %v408, 1.442695
    %v410 = vpow.pop %v409
    %v411 = vadd.f32 %v410, 1.0
    %v412 = vrcp.pop %v411
    %v413 = vmul.f32 %v411, %v412
    %v414 = vsub.f32 1.0, %v413
    %v415 = vmul.f32 %v412, %v414
    %v416 = vadd.f32 %v412, %v415
    %vm417 = vweird.f32 %v411
    %vm418 = vweird.f32 %v412
    %vm419 = vmor %vm417, %vm418
    %v420 = vsel %vm419, %v412, %v416
    %v421 = vand.u32 2147483647, %v411
    %vm422 = vcmp.eq.f32.partialorder %v421, 8.507059e+37
    %v423 = vand.u32 %v411, 2147483648
    %v424 = vor.u32 1.1754944e-38, %v423
    %v425 = vsel %vm422, %v424, %v420
    %v426 = vmul.f32 1.0, %v425
    %v427 = vmul.f32 %v407, %v387
    %v428 = vadd.f32 %v347, %v427
    %v429 = vtanh.pop %v428
    %v430 = vsub.f32 1.0, %v426
    %v431 = vmul.f32 %v430, %v429
    %v432 = vmul.f32 %v426, %v204
    %v433 = vadd.f32 %v431, %v432
    %434 = vst [vmem:[%s8] sm:$0x1] %v433
    %v435 = vld [vmem:[%s8] sm:$0xff]
    %v436 = vld [vmem:[#allocation9] sm:$0xff]
    %v437 = vld [vmem:[#allocation9 + $0x8] sm:$0xff]
    %v438 = vld [vmem:[#allocation9 + $0x10] sm:$0xff]
    %v439 = vld [vmem:[#allocation9 + $0x18] sm:$0xff]
    %v440 = vld [vmem:[#allocation9 + $0x20] sm:$0xff]
    %v441 = vld [vmem:[#allocation9 + $0x28] sm:$0xff]
    %v442 = vld [vmem:[#allocation9 + $0x30] sm:$0xff]
    %v443 = vld [vmem:[#allocation9 + $0x38] sm:$0xff]
    %v444 = vld [vmem:[#allocation9 + $0x40] sm:$0xff]
    %v445 = vld [vmem:[#allocation9 + $0x48] sm:$0xff]
    %v446 = vld [vmem:[#allocation9 + $0x50] sm:$0xff]
    %v447 = vld [vmem:[#allocation9 + $0x58] sm:$0xff]
    %v448 = vld [vmem:[#allocation9 + $0x60] sm:$0xff]
    %v449 = vld [vmem:[#allocation9 + $0x68] sm:$0xff]
    %v450 = vld [vmem:[#allocation9 + $0x70] sm:$0xff]
    %v451 = vld [vmem:[#allocation9 + $0x78] sm:$0xff]
    %v452 = vld [vmem:[%s6] sm:$0x1]
    %v454 = vperm.slane %v452, 0
    %456 = vmatpush.msra.mxu0 %v451
    %457 = vmatpush.msra.mxu0 %v450
    %458 = vmatpush.msra.mxu0 %v449
    %459 = vmatpush.msra.mxu0 %v448
    %460 = vmatpush.msra.mxu0 %v447
    %461 = vmatpush.msra.mxu0 %v446
    %462 = vmatpush.msra.mxu0 %v445
    %463 = vmatpush.msra.mxu0 %v444
    %464 = vmatpush.msra.mxu0 %v443
    %465 = vmatpush.msra.mxu0 %v442
    %466 = vmatpush.msra.mxu0 %v441
    %467 = vmatpush.msra.mxu0 %v440
    %468 = vmatpush.msra.mxu0 %v439
    %469 = vmatpush.msra.mxu0 %v438
    %470 = vmatpush.msra.mxu0 %v437
    %471 = vmatpush.msra.mxu0 %v436
    %472 = vmatmul.f32.gmra.mxu0 %v435
    %v473 = vpop.f32.mrf.mxu0
    %v474 = vadd.f32 %v454, %v473
    %475 = vdwg.mxu0
    %v476 = vlaneseq
    %v477 = vand.u32 %v476, 127
    %vm478 = vcmp.lt.s32.totalorder %v477, 64
    %v479 = vsel %vm478, %v474, -1e+30
    %480 = vmax.xlane.f32.xlu0 %v479
    %v481 = vpop.xlane.xlu0 %480
    %v482 = vsub.f32 %v479, %v481
    %v483 = vmul.f32 %v482, 1.442695
    %v484 = vpow.pop %v483
    %485 = vadd.xlane.f32.xlu0 %v484
    %v486 = vpop.xlane.xlu0 %485
    %v487 = vlog2.pop %v486
    %v488 = vmul.f32 %v487, 0.6931472
    %v489 = vsub.f32 %v482, %v488
    %490 = vst [vmem:[%s7] sm:$0xff] %v489
    // Predicated region
    $region38: #{decoder_forward.1} parent=1 // pred_check
      _
    $region39: #{decoder_forward.1} parent=1 // pred_check_branch
      %492 = sbr.rel (0) target = $region41
    $region40: #{decoder_forward.1} parent=1 // pred_region
      _
    $region41: #{decoder_forward.1} parent=1 // pred_fallthru
      _
    // Predicated region
    $region42: #{decoder_forward.1} parent=1 // pred_check
      _
    $region43: #{decoder_forward.1} parent=1 // pred_check_branch
      %494 = sbr.rel (0) target = $region45
    $region44: #{decoder_forward.1} parent=1 // pred_region
      _
    $region45: #{decoder_forward.1} parent=1 // pred_fallthru
      _
    // Predicated region
    $region46: #{decoder_forward.1} parent=1 // pred_check
      _
    $region47: #{decoder_forward.1} parent=1 // pred_check_branch
      %496 = sbr.rel (0) target = $region49
    $region48: #{decoder_forward.1} parent=1 // pred_region
      _
    $region49: #{decoder_forward.1} parent=1 // pred_fallthru
      _
    // Predicated region
    $region50: #{decoder_forward.1} parent=1 // pred_check
      _
    $region51: #{decoder_forward.1} parent=1 // pred_check_branch
      %498 = sbr.rel (0) target = $region53
    $region52: #{decoder_forward.1} parent=1 // pred_region
      _
    $region53: #{decoder_forward.1} parent=1 // pred_fallthru
      _
    %499 = vsyncpa [#allocation6], 1
    %500 = vsyncpa [#allocation8], 1

</llo_original>
